<compile_context>
chip_gen: v7x
topology: tpu7x:2x2x1
jax: 0.10.0
libtpu: 0.0.40
codegen_flags: <defaults>
</compile_context>

<pallas_src>
import jax
import jax.numpy as jnp
from jax import lax
from jax.experimental import pallas as pl
from jax.experimental.pallas import tpu as pltpu


def _round_up(x, m):
    return (x + m - 1) // m * m


def _cdiv(a, b):
    return -(-a // b)


def _pad2d(a, rows, cols):
    """Zero-pad a 2-D array to (rows, cols)."""
    out = jnp.zeros((rows, cols), a.dtype)
    return out.at[: a.shape[0], : a.shape[1]].set(a)


def _make_encoder_kernel(hidden_widths_p, head_width_p, conditional, num_labels_p):
    """Fused kernel: n hidden (Linear+ReLU) layers + one fused two-head matmul.

    Conditional ref layout:
        x_ref, c_ref, w0x, w0c, w1..w_{n-1}, w_head, bias_pack, out_ref
    Non-conditional ref layout:
        x_ref, w0, w1..w_{n-1}, w_head, bias_pack, out_ref

    x is f32 (TM, D) (cast to bf16 in-kernel); c is int32 (TM, 1); weights are
    bf16 (feature dims zero-padded to 128); bias_pack is f32 (1, sum(widths));
    output is (TM, head_width_p) in out_ref.dtype (bf16 or f32).
    """
    n_hidden = len(hidden_widths_p)

    def compute(x_bf16, onehot, w_first, w_rest, w_head_ref, bias_ref, out_ref):
        w0 = hidden_widths_p[0]
        z = jnp.dot(x_bf16, w_first[0][...], preferred_element_type=jnp.float32)
        if onehot is not None:
            z = z + jnp.dot(onehot, w_first[1][...],
                            preferred_element_type=jnp.float32)
        z = z + bias_ref[:, 0:w0]                       # f32 bias add / ReLU on VPU
        h = jnp.maximum(z, 0.0).astype(jnp.bfloat16)
        off = w0
        for li in range(1, n_hidden):
            width = hidden_widths_p[li]
            z = jnp.dot(h, w_rest[li - 1][...],
                        preferred_element_type=jnp.float32) \
                + bias_ref[:, off:off + width]
            off += width
            h = jnp.maximum(z, 0.0).astype(jnp.bfloat16)
        out_ref[...] = (jnp.dot(h, w_head_ref[...],
                                preferred_element_type=jnp.float32)
                        + bias_ref[:, off:off + head_width_p]).astype(out_ref.dtype)

    if conditional:
        def kernel(x_ref, c_ref, *refs):
            w_first = (refs[0], refs[1])                 # x-part / label-part of L0
            w_rest = refs[2:n_hidden + 1]
            w_head_ref = refs[n_hidden + 1]
            bias_ref = refs[n_hidden + 2]
            out_ref = refs[n_hidden + 3]
            tm = x_ref.shape[0]
            x = x_ref[...].astype(jnp.bfloat16)
            # Build the one-hot block in-kernel (no wrapper concat/pad round trip).
            lbl = lax.broadcasted_iota(jnp.int32, (tm, num_labels_p), 1)
            onehot = (lbl == c_ref[...]).astype(jnp.bfloat16)
            compute(x, onehot, w_first, w_rest, w_head_ref, bias_ref, out_ref)
        return kernel

    def kernel(x_ref, *refs):
        w_first = (refs[0],)
        w_rest = refs[1:n_hidden]
        w_head_ref = refs[n_hidden]
        bias_ref = refs[n_hidden + 1]
        out_ref = refs[n_hidden + 2]
        x = x_ref[...].astype(jnp.bfloat16)
        compute(x, None, w_first, w_rest, w_head_ref, bias_ref, out_ref)
    return kernel


class Encoder2_1:
    """JAX/Pallas port of the PyTorch Encoder2_1 module."""

    _MAX_TILE_ROWS = 2048   # per-step footprint is tiny; big tiles amortize overhead
    _MIN_ROWS_PER_CORE = 128
    _LANE = 128

    def __init__(self, layer_sizes, latent_size, conditional, num_labels,
                 num_domains, key, bf16_output=True):
        self.conditional = conditional
        self.num_labels = num_labels
        self.num_domains = num_domains          # unused in forward (matches spec)
        self.bf16_output = bf16_output          # bf16 writeback halves HBM out traffic
        self.latent_size = latent_size

        layer_sizes = list(layer_sizes)
        assert len(layer_sizes) >= 2
        self.x_features = layer_sizes[0]        # raw x width (before labels)
        if self.conditional:
            layer_sizes[0] += num_labels
        self.layer_sizes = layer_sizes

        # ---- logical (unpadded, f32) parameters, PyTorch-default init -------
        self.params = []  # list of (W[in,out], b[1,out]) for hidden layers
        keys = jax.random.split(key, 2 * (len(layer_sizes) - 1) + 4)
        ki = 0
        for in_size, out_size in zip(layer_sizes[:-1], layer_sizes[1:]):
            bound = 1.0 / float(in_size) ** 0.5
            w = jax.random.uniform(keys[ki], (in_size, out_size),
                                   jnp.float32, -bound, bound)
            b = jax.random.uniform(keys[ki + 1], (1, out_size),
                                   jnp.float32, -bound, bound)
            ki += 2
            self.params.append((w, b))

        in_size = layer_sizes[-1]
        bound = 1.0 / float(in_size) ** 0.5
        self.w_means = jax.random.uniform(keys[ki], (in_size, latent_size),
                                          jnp.float32, -bound, bound)
        self.b_means = jax.random.uniform(keys[ki + 1], (1, latent_size),
                                          jnp.float32, -bound, bound)
        self.w_logvar = jax.random.uniform(keys[ki + 2], (in_size, latent_size),
                                           jnp.float32, -bound, bound)
        self.b_logvar = jax.random.uniform(keys[ki + 3], (1, latent_size),
                                           jnp.float32, -bound, bound)

        # ---- padded / packed kernel-side parameters --------------------------
        L = self._LANE
        self.hidden_p = [_round_up(s, L) for s in layer_sizes[1:]]
        self.head_p = _round_up(2 * latent_size, L)
        self.num_labels_p = _round_up(num_labels, L) if self.conditional else 0

        w_kernel = []
        bias_chunks = []

        w0, b0 = self.params[0]
        if self.conditional:
            # Split the first layer into an x-part and a label-part; the label
            # part multiplies the in-kernel one-hot block.
            w0x = w0[: self.x_features]
            w0c = w0[self.x_features:]
            w_kernel.append(_pad2d(w0x, self.x_features,
                                   self.hidden_p[0]).astype(jnp.bfloat16))
            w_kernel.append(_pad2d(w0c, self.num_labels_p,
                                   self.hidden_p[0]).astype(jnp.bfloat16))
        else:
            w_kernel.append(_pad2d(w0, self.x_features,
                                   self.hidden_p[0]).astype(jnp.bfloat16))
        bias_chunks.append(_pad2d(b0, 1, self.hidden_p[0]))       # stays f32

        prev_p = self.hidden_p[0]
        for (w, b), out_p in zip(self.params[1:], self.hidden_p[1:]):
            w_kernel.append(_pad2d(w, prev_p, out_p).astype(jnp.bfloat16))
            bias_chunks.append(_pad2d(b, 1, out_p))
            prev_p = out_p

        # Fused head: [hidden, 2*latent] weight / [1, 2*latent] bias.
        w_head = jnp.concatenate((self.w_means, self.w_logvar), axis=1)
        b_head = jnp.concatenate((self.b_means, self.b_logvar), axis=1)
        w_kernel.append(_pad2d(w_head, prev_p, self.head_p).astype(jnp.bfloat16))
        bias_chunks.append(_pad2d(b_head, 1, self.head_p))

        self.w_kernel = w_kernel                                  # bf16 weights
        self.bias_pack = jnp.concatenate(bias_chunks, axis=1)     # (1, sum) f32

        self._kernel = _make_encoder_kernel(self.hidden_p, self.head_p,
                                            self.conditional, self.num_labels_p)

    def _tiling(self, B):
        """Even batch tiling with minimal padding; >=2 tiles for v7x megacore."""
        cap = self._MAX_TILE_ROWS
        n_tiles = max(1, _cdiv(B, cap))
        if B >= 2 * self._MIN_ROWS_PER_CORE and n_tiles < 2:
            n_tiles = 2           # shard batch across both TensorCores on v7x
        if n_tiles > 1 and n_tiles % 2:
            n_tiles += 1          # even step count for 2-core chips
        TM = _round_up(_cdiv(B, n_tiles), 16)
        return n_tiles, TM, n_tiles * TM

    def __call__(self, x, c=None, d=None):
        # d is unused in the reference forward pass.
        x = jnp.asarray(x)
        B, D = x.shape
        assert D == self.x_features

        n_tiles, TM, B_p = self._tiling(B)

        # Only the batch axis is padded; feature axis stays at its natural
        # width (block last-dim == full array dim), no bf16/concat round trip.
        if B_p != B:
            x_in = jnp.zeros((B_p, D), x.dtype).at[:B].set(x)
        else:
            x_in = x

        in_specs = [pl.BlockSpec((TM, D), lambda i: (i, 0))]
        flat_args = [x_in]

        if self.conditional:
            c = jnp.asarray(c)
            if c.ndim == 2:          # idx2onehot accepts [B] or [B, 1]
                c = c[:, 0]
            c = c.astype(jnp.int32).reshape(B, 1)
            if B_p != B:
                c_in = jnp.zeros((B_p, 1), jnp.int32).at[:B].set(c)
            else:
                c_in = c
            in_specs.append(pl.BlockSpec((TM, 1), lambda i: (i, 0)))
            flat_args.append(c_in)

        for w in self.w_kernel:                        # weights stay VMEM-resident
            in_specs.append(pl.BlockSpec(w.shape, lambda i: (0, 0)))
            flat_args.append(w)
        in_specs.append(pl.BlockSpec(self.bias_pack.shape, lambda i: (0, 0)))
        flat_args.append(self.bias_pack)

        out_dtype = jnp.bfloat16 if self.bf16_output else jnp.float32
        out = pl.pallas_call(
            self._kernel,
            out_shape=jax.ShapeDtypeStruct((B_p, self.head_p), out_dtype),
            grid=(n_tiles,),
            in_specs=in_specs,
            out_specs=pl.BlockSpec((TM, self.head_p), lambda i: (i, 0)),
            compiler_params=pltpu.CompilerParams(
                dimension_semantics=("parallel",)),
        )(*flat_args)

        means = out[:B, : self.latent_size].astype(jnp.float32)
        log_vars = out[:B, self.latent_size: 2 * self.latent_size].astype(jnp.float32)
        return means, log_vars


def _reference_forward(enc, x, c=None):
    """Pure-JAX f32 reference for correctness checking."""
    if enc.conditional:
        c_onehot = jax.nn.one_hot(c, enc.num_labels, dtype=x.dtype)
        x = jnp.concatenate((x, c_onehot), axis=-1)
    h = x
    for w, b in enc.params:
        h = jnp.maximum(h @ w + b, 0.0)
    means = h @ enc.w_means + enc.b_means
    log_vars = h @ enc.w_logvar + enc.b_logvar
    return means, log_vars


if __name__ == "__main__":
    key = jax.random.PRNGKey(0)
    k_param, k_x, k_c, k_x2, k_c2, k_param2, k_x3 = jax.random.split(key, 7)

    # Small config consistent with the module's constructor:
    #   layer_sizes=[32, 64, 32], latent_size=16, conditional=True,
    #   num_labels=4, num_domains=2 (num_domains is unused in forward).
    layer_sizes = [32, 64, 32]
    latent_size = 16
    num_labels = 4
    num_domains = 2

    enc = Encoder2_1(layer_sizes, latent_size, conditional=True,
                     num_labels=num_labels, num_domains=num_domains,
                     key=k_param)

    # ---- small batch (single grid step) ----------------------------------
    B = 2
    x = jax.random.normal(k_x, (B, layer_sizes[0]), jnp.float32)
    c = jax.random.randint(k_c, (B,), 0, num_labels)
    means, log_vars = enc(x, c)
    means = jax.block_until_ready(means)
    log_vars = jax.block_until_ready(log_vars)
    ref_m, ref_lv = _reference_forward(enc, x, c)
    assert means.shape == (B, latent_size)
    assert log_vars.shape == (B, latent_size)
    assert jnp.allclose(means, ref_m, atol=5e-2, rtol=5e-2)
    assert jnp.allclose(log_vars, ref_lv, atol=5e-2, rtol=5e-2)

    # ---- larger batch: multi-tile grid (megacore split) + padding path ----
    B2 = 300
    x2 = jax.random.normal(k_x2, (B2, layer_sizes[0]), jnp.float32)
    c2 = jax.random.randint(k_c2, (B2,), 0, num_labels)
    m2, lv2 = enc(x2, c2)
    m2 = jax.block_until_ready(m2)
    ref_m2, ref_lv2 = _reference_forward(enc, x2, c2)
    assert jnp.allclose(m2, ref_m2, atol=5e-2, rtol=5e-2)
    assert jnp.allclose(lv2, ref_lv2, atol=5e-2, rtol=5e-2)

    # ---- non-conditional code path ----------------------------------------
    enc_nc = Encoder2_1([32, 64, 32], latent_size, conditional=False,
                        num_labels=0, num_domains=num_domains, key=k_param2)
    x3 = jax.random.normal(k_x3, (8, 32), jnp.float32)
    m3, lv3 = enc_nc(x3)
    m3 = jax.block_until_ready(m3)
    ref_m3, ref_lv3 = _reference_forward(enc_nc, x3)
    assert jnp.allclose(m3, ref_m3, atol=5e-2, rtol=5e-2)
    assert jnp.allclose(lv3, ref_lv3, atol=5e-2, rtol=5e-2)

    print("KERNEL_OK")
</pallas_src>

<mosaic_0001>
module attributes {stable_mosaic.version = 11 : i64} {
  func.func @kernel(%arg0: i32, %arg1: memref<16x32xf32, #tpu.memory_space<vmem>>, %arg2: memref<16x1xi32, #tpu.memory_space<vmem>>, %arg3: memref<32x128xbf16, #tpu.memory_space<vmem>>, %arg4: memref<128x128xbf16, #tpu.memory_space<vmem>>, %arg5: memref<128x128xbf16, #tpu.memory_space<vmem>>, %arg6: memref<128x128xbf16, #tpu.memory_space<vmem>>, %arg7: memref<1x384xf32, #tpu.memory_space<vmem>>, %arg8: memref<16x128xbf16, #tpu.memory_space<vmem>>) attributes {dimension_semantics = [#tpu.dimension_semantics<parallel>], iteration_bounds = array<i64: 1>, scalar_prefetch = 0 : i64, scratch_operands = 0 : i64, tpu.core_type = #tpu.core_type<tc>, window_params = [{transform_indices = @transform_0, window_bounds = array<i64: 16, 32>}, {transform_indices = @transform_1, window_bounds = array<i64: 16, 1>}, {pipeline_mode = #tpu.pipeline_mode<synchronous>, transform_indices = @transform_2, window_bounds = array<i64: 32, 128>}, {pipeline_mode = #tpu.pipeline_mode<synchronous>, transform_indices = @transform_3, window_bounds = array<i64: 128, 128>}, {pipeline_mode = #tpu.pipeline_mode<synchronous>, transform_indices = @transform_4, window_bounds = array<i64: 128, 128>}, {pipeline_mode = #tpu.pipeline_mode<synchronous>, transform_indices = @transform_5, window_bounds = array<i64: 128, 128>}, {pipeline_mode = #tpu.pipeline_mode<synchronous>, transform_indices = @transform_6, window_bounds = array<i64: 1, 384>}, {transform_indices = @transform_7, window_bounds = array<i64: 16, 128>}]} {
    %c0 = arith.constant 0 : index
    %c0_0 = arith.constant 0 : index
    %0 = vector.load %arg1[%c0, %c0_0] : memref<16x32xf32, #tpu.memory_space<vmem>>, vector<16x32xf32>
    %1 = arith.truncf %0 : vector<16x32xf32> to vector<16x32xbf16>
    %2 = tpu.iota {dimensions = array<i32: 1>} : vector<16x128xi32>
    %c0_1 = arith.constant 0 : index
    %c0_2 = arith.constant 0 : index
    %3 = vector.load %arg2[%c0_1, %c0_2] : memref<16x1xi32, #tpu.memory_space<vmem>>, vector<16x1xi32>
    %4 = vector.broadcast %3 : vector<16x1xi32> to vector<16x128xi32>
    %5 = arith.cmpi eq, %2, %4 : vector<16x128xi32>
    %6 = arith.extui %5 : vector<16x128xi1> to vector<16x128xi32>
    %7 = arith.sitofp %6 : vector<16x128xi32> to vector<16x128xf32>
    %8 = arith.truncf %7 : vector<16x128xf32> to vector<16x128xbf16>
    %c0_3 = arith.constant 0 : index
    %c0_4 = arith.constant 0 : index
    %9 = vector.load %arg3[%c0_3, %c0_4] : memref<32x128xbf16, #tpu.memory_space<vmem>>, vector<32x128xbf16>
    %cst = arith.constant dense<0.000000e+00> : vector<16x128xf32>
    %10 = tpu.matmul %1, %9, %cst {dimension_numbers = #tpu.dot_dimension_numbers<[1], [0], [0], [1], [0, 0, 1, 1], [], []>} : vector<16x32xbf16>, vector<32x128xbf16>, vector<16x128xf32> -> vector<16x128xf32>
    %c0_5 = arith.constant 0 : index
    %c0_6 = arith.constant 0 : index
    %11 = vector.load %arg4[%c0_5, %c0_6] : memref<128x128xbf16, #tpu.memory_space<vmem>>, vector<128x128xbf16>
    %cst_7 = arith.constant dense<0.000000e+00> : vector<16x128xf32>
    %12 = tpu.matmul %8, %11, %cst_7 {dimension_numbers = #tpu.dot_dimension_numbers<[1], [0], [0], [1], [0, 0, 1, 1], [], []>} : vector<16x128xbf16>, vector<128x128xbf16>, vector<16x128xf32> -> vector<16x128xf32>
    %13 = arith.addf %10, %12 : vector<16x128xf32>
    %c0_8 = arith.constant 0 : index
    %c0_9 = arith.constant 0 : index
    %14 = vector.load %arg7[%c0_8, %c0_9] : memref<1x384xf32, #tpu.memory_space<vmem>>, vector<1x128xf32>
    %15 = vector.broadcast %14 : vector<1x128xf32> to vector<16x128xf32>
    %16 = arith.addf %13, %15 : vector<16x128xf32>
    %cst_10 = arith.constant 0.000000e+00 : f32
    %17 = vector.broadcast %cst_10 : f32 to vector<16x128xf32>
    %18 = arith.maximumf %16, %17 : vector<16x128xf32>
    %19 = arith.truncf %18 : vector<16x128xf32> to vector<16x128xbf16>
    %c0_11 = arith.constant 0 : index
    %c0_12 = arith.constant 0 : index
    %20 = vector.load %arg5[%c0_11, %c0_12] : memref<128x128xbf16, #tpu.memory_space<vmem>>, vector<128x128xbf16>
    %cst_13 = arith.constant dense<0.000000e+00> : vector<16x128xf32>
    %21 = tpu.matmul %19, %20, %cst_13 {dimension_numbers = #tpu.dot_dimension_numbers<[1], [0], [0], [1], [0, 0, 1, 1], [], []>} : vector<16x128xbf16>, vector<128x128xbf16>, vector<16x128xf32> -> vector<16x128xf32>
    %c0_14 = arith.constant 0 : index
    %c128 = arith.constant 128 : index
    %22 = vector.load %arg7[%c0_14, %c128] : memref<1x384xf32, #tpu.memory_space<vmem>>, vector<1x128xf32>
    %23 = vector.broadcast %22 : vector<1x128xf32> to vector<16x128xf32>
    %24 = arith.addf %21, %23 : vector<16x128xf32>
    %cst_15 = arith.constant 0.000000e+00 : f32
    %25 = vector.broadcast %cst_15 : f32 to vector<16x128xf32>
    %26 = arith.maximumf %24, %25 : vector<16x128xf32>
    %27 = arith.truncf %26 : vector<16x128xf32> to vector<16x128xbf16>
    %c0_16 = arith.constant 0 : index
    %c0_17 = arith.constant 0 : index
    %28 = vector.load %arg6[%c0_16, %c0_17] : memref<128x128xbf16, #tpu.memory_space<vmem>>, vector<128x128xbf16>
    %cst_18 = arith.constant dense<0.000000e+00> : vector<16x128xf32>
    %29 = tpu.matmul %27, %28, %cst_18 {dimension_numbers = #tpu.dot_dimension_numbers<[1], [0], [0], [1], [0, 0, 1, 1], [], []>} : vector<16x128xbf16>, vector<128x128xbf16>, vector<16x128xf32> -> vector<16x128xf32>
    %c0_19 = arith.constant 0 : index
    %c256 = arith.constant 256 : index
    %30 = vector.load %arg7[%c0_19, %c256] : memref<1x384xf32, #tpu.memory_space<vmem>>, vector<1x128xf32>
    %31 = vector.broadcast %30 : vector<1x128xf32> to vector<16x128xf32>
    %32 = arith.addf %29, %31 : vector<16x128xf32>
    %33 = arith.truncf %32 : vector<16x128xf32> to vector<16x128xbf16>
    %c0_20 = arith.constant 0 : index
    %c0_21 = arith.constant 0 : index
    %34 = vector.load %arg8[%c0_20, %c0_21] : memref<16x128xbf16, #tpu.memory_space<vmem>>, vector<16x128xbf16>
    tpu.vector_store %arg8[%c0_20, %c0_21], %33 {strides = array<i32>} : memref<16x128xbf16, #tpu.memory_space<vmem>>, vector<16x128xbf16>,
    return
  }
  func.func @transform_0(%arg0: i32) -> (i32, i32) {
    %c0_i32 = arith.constant 0 : i32
    %c0_i32_0 = arith.constant 0 : i32
    return %arg0, %c0_i32 : i32, i32
  }
  func.func @transform_1(%arg0: i32) -> (i32, i32) {
    %c0_i32 = arith.constant 0 : i32
    %c0_i32_0 = arith.constant 0 : i32
    return %arg0, %c0_i32 : i32, i32
  }
  func.func @transform_2(%arg0: i32) -> (i32, i32) {
    %c0_i32 = arith.constant 0 : i32
    %c0_i32_0 = arith.constant 0 : i32
    %c0_i32_1 = arith.constant 0 : i32
    return %c0_i32, %c0_i32_0 : i32, i32
  }
  func.func @transform_3(%arg0: i32) -> (i32, i32) {
    %c0_i32 = arith.constant 0 : i32
    %c0_i32_0 = arith.constant 0 : i32
    %c0_i32_1 = arith.constant 0 : i32
    return %c0_i32, %c0_i32_0 : i32, i32
  }
  func.func @transform_4(%arg0: i32) -> (i32, i32) {
    %c0_i32 = arith.constant 0 : i32
    %c0_i32_0 = arith.constant 0 : i32
    %c0_i32_1 = arith.constant 0 : i32
    return %c0_i32, %c0_i32_0 : i32, i32
  }
  func.func @transform_5(%arg0: i32) -> (i32, i32) {
    %c0_i32 = arith.constant 0 : i32
    %c0_i32_0 = arith.constant 0 : i32
    %c0_i32_1 = arith.constant 0 : i32
    return %c0_i32, %c0_i32_0 : i32, i32
  }
  func.func @transform_6(%arg0: i32) -> (i32, i32) {
    %c0_i32 = arith.constant 0 : i32
    %c0_i32_0 = arith.constant 0 : i32
    %c0_i32_1 = arith.constant 0 : i32
    return %c0_i32, %c0_i32_0 : i32, i32
  }
  func.func @transform_7(%arg0: i32) -> (i32, i32) {
    %c0_i32 = arith.constant 0 : i32
    %c0_i32_0 = arith.constant 0 : i32
    return %arg0, %c0_i32 : i32, i32
  }
}

</mosaic_0001>

<llo_original>
// kernel: tpu_custom_call.1
$region0: #{tpu_custom_call.1}
  #allocation0 [shape = 'u32[]', space=smem, size = 0x4, offset = 0x4, fixed_abs, tag = 'smem constant byte address 0x4 - core index']
  #allocation1 [shape = 'u32[144,128]{1,0:T(1,128)}', space=vmem, size = 0x12000, scoped, tag = 'internal scratch']
  %s0 = inlined_call_operand.vmem [shape: f32[16,32], index: 0, kind: input, shape index: {}]
  %s1 = inlined_call_operand.vmem [shape: s32[16,1], index: 1, kind: input, shape index: {}]
  %s2 = inlined_call_operand.hbm [shape: bf16[32,128], index: 2, kind: input, shape index: {}]
  %s3 = inlined_call_operand.hbm [shape: bf16[128,128], index: 3, kind: input, shape index: {}]
  %s4 = inlined_call_operand.hbm [shape: bf16[128,128], index: 4, kind: input, shape index: {}]
  %s5 = inlined_call_operand.hbm [shape: bf16[128,128], index: 5, kind: input, shape index: {}]
  %s6 = inlined_call_operand.vmem [shape: f32[1,384], index: 6, kind: input, shape index: {}]
  %s7 = inlined_call_operand.hbm [shape: bf16[16,128], index: 7, kind: output, shape index: {}]
  %s8 = sld [smem:[#allocation0]]
  $region54: #{tpu_custom_call.1} parent=0
    _
  %s10 = ssub.s32 1, %s8
  %s11 = scalar_select 0, %s10, %s8
  $region1: #{tpu_custom_call.1} parent=0
    #allocation2 [shape = 'u8[8192]{0}', space=vmem, size = 0x2000, scoped, tag = 'input window, operand 2, single buffered']
    #allocation3 [shape = 's32[1]{0}', space=sflag, size = 0x4, scoped, tag = 'scoped memory for tpu_custom_call.1']
    #allocation4 [shape = 's32[1]{0}', space=sflag, size = 0x4, scoped, tag = 'scoped memory for tpu_custom_call.1']
    #allocation5 [shape = 'u8[32768]{0}', space=vmem, size = 0x8000, scoped, tag = 'input window, operand 3, single buffered']
    #allocation6 [shape = 's32[1]{0}', space=sflag, size = 0x4, scoped, tag = 'scoped memory for tpu_custom_call.1']
    #allocation7 [shape = 'u8[32768]{0}', space=vmem, size = 0x8000, scoped, tag = 'input window, operand 4, single buffered']
    #allocation8 [shape = 'u8[32768]{0}', space=vmem, size = 0x8000, scoped, tag = 'input window, operand 5, single buffered']
    #allocation9 [shape = 's32[1]{0}', space=sflag, size = 0x4, scoped, tag = 'scoped memory for tpu_custom_call.1']
    #allocation10 [shape = 'u8[4096]{0}', space=vmem, size = 0x1000, scoped, tag = 'output window, operand 0, single buffered']
    %12 = vsyncpa [#allocation3], 0
    %13 = vsyncpa [#allocation6], 0
    %14 = vsyncpa [#allocation9], 0
    %15 = vsyncpa [#allocation4], 0
    // Predicated region
    $region2: #{tpu_custom_call.1} parent=1 // pred_check
      _
    $region3: #{tpu_custom_call.1} parent=1 // pred_check_branch
      %17 = sbr.rel (0) target = $region5
    $region4: #{tpu_custom_call.1} parent=1 // pred_region
      _
    $region5: #{tpu_custom_call.1} parent=1 // pred_fallthru
      _
    // Predicated region
    $region6: #{tpu_custom_call.1} parent=1 // pred_check
      _
    $region7: #{tpu_custom_call.1} parent=1 // pred_check_branch
      %19 = sbr.rel (0) target = $region9
    $region8: #{tpu_custom_call.1} parent=1 // pred_region
      _
    $region9: #{tpu_custom_call.1} parent=1 // pred_fallthru
      _
    // Predicated region
    $region10: #{tpu_custom_call.1} parent=1 // pred_check
      _
    $region11: #{tpu_custom_call.1} parent=1 // pred_check_branch
      %21 = sbr.rel (0) target = $region13
    $region12: #{tpu_custom_call.1} parent=1 // pred_region
      %s23 = ssub.s32 256, 256
      %24 = vsyncadd [#allocation3], %s23
      %s25 = sshll.u32 [#allocation2], 4
      %s26 = int_to_ptr.vmem [resolvable:$true] %s25
      %31 = dma.hbm_to_vmem [thread:$0]  %s2, 256, %s26, [#allocation3], 64, 64, 4
    $region13: #{tpu_custom_call.1} parent=1 // pred_fallthru
      _
    // Predicated region
    $region14: #{tpu_custom_call.1} parent=1 // pred_check
      _
    $region15: #{tpu_custom_call.1} parent=1 // pred_check_branch
      %33 = sbr.rel (0) target = $region17
    $region16: #{tpu_custom_call.1} parent=1 // pred_region
      %s35 = ssub.s32 1024, 1024
      %36 = vsyncadd [#allocation6], %s35
      %s37 = sshll.u32 [#allocation5], 4
      %s38 = int_to_ptr.vmem [resolvable:$true] %s37
      %43 = dma.hbm_to_vmem [thread:$0]  %s3, 1024, %s38, [#allocation6], 64, 64, 4
    $region17: #{tpu_custom_call.1} parent=1 // pred_fallthru
      _
    // Predicated region
    $region18: #{tpu_custom_call.1} parent=1 // pred_check
      _
    $region19: #{tpu_custom_call.1} parent=1 // pred_check_branch
      %45 = sbr.rel (0) target = $region21
    $region20: #{tpu_custom_call.1} parent=1 // pred_region
      %s47 = ssub.s32 1024, 1024
      %48 = vsyncadd [#allocation6], %s47
      %s49 = sshll.u32 [#allocation7], 4
      %s50 = int_to_ptr.vmem [resolvable:$true] %s49
      %55 = dma.hbm_to_vmem [thread:$0]  %s4, 1024, %s50, [#allocation6], 64, 64, 4
    $region21: #{tpu_custom_call.1} parent=1 // pred_fallthru
      _
    // Predicated region
    $region22: #{tpu_custom_call.1} parent=1 // pred_check
      _
    $region23: #{tpu_custom_call.1} parent=1 // pred_check_branch
      %57 = sbr.rel (0) target = $region25
    $region24: #{tpu_custom_call.1} parent=1 // pred_region
      %s59 = ssub.s32 1024, 1024
      %60 = vsyncadd [#allocation9], %s59
      %s61 = sshll.u32 [#allocation8], 4
      %s62 = int_to_ptr.vmem [resolvable:$true] %s61
      %67 = dma.hbm_to_vmem [thread:$0]  %s5, 1024, %s62, [#allocation9], 64, 64, 4
    $region25: #{tpu_custom_call.1} parent=1 // pred_fallthru
      _
    // Predicated region
    $region26: #{tpu_custom_call.1} parent=1 // pred_check
      _
    $region27: #{tpu_custom_call.1} parent=1 // pred_check_branch
      %69 = sbr.rel (0) target = $region29
    $region28: #{tpu_custom_call.1} parent=1 // pred_region
      _
    $region29: #{tpu_custom_call.1} parent=1 // pred_fallthru
      _
    // Predicated region
    $region30: #{tpu_custom_call.1} parent=1 // pred_check
      _
    $region31: #{tpu_custom_call.1} parent=1 // pred_check_branch
      %71 = sbr.rel (0) target = $region33
    $region32: #{tpu_custom_call.1} parent=1 // pred_region
      %72 = dma.done [#allocation3], 256
    $region33: #{tpu_custom_call.1} parent=1 // pred_fallthru
      _
    // Predicated region
    $region34: #{tpu_custom_call.1} parent=1 // pred_check
      _
    $region35: #{tpu_custom_call.1} parent=1 // pred_check_branch
      %74 = sbr.rel (0) target = $region37
    $region36: #{tpu_custom_call.1} parent=1 // pred_region
      %75 = dma.done [#allocation6], 1024
    $region37: #{tpu_custom_call.1} parent=1 // pred_fallthru
      _
    // Predicated region
    $region38: #{tpu_custom_call.1} parent=1 // pred_check
      _
    $region39: #{tpu_custom_call.1} parent=1 // pred_check_branch
      %77 = sbr.rel (0) target = $region41
    $region40: #{tpu_custom_call.1} parent=1 // pred_region
      %78 = dma.done [#allocation6], 1024
    $region41: #{tpu_custom_call.1} parent=1 // pred_fallthru
      _
    // Predicated region
    $region42: #{tpu_custom_call.1} parent=1 // pred_check
      _
    $region43: #{tpu_custom_call.1} parent=1 // pred_check_branch
      %80 = sbr.rel (0) target = $region45
    $region44: #{tpu_custom_call.1} parent=1 // pred_region
      %81 = dma.done [#allocation9], 1024
    $region45: #{tpu_custom_call.1} parent=1 // pred_fallthru
      _
    %v83 = vld [vmem:[%s0] sm:$0xff]
    %v84 = vld [vmem:[%s0 + $0x8] sm:$0xff]
    %v85 = vpack.c.bf16 %v84, %v83
    %v86 = vlaneseq
    %v87 = vand.u32 %v86, 127
    %v88 = vld [vmem:[%s1] sm:$0xff]
    %v89 = vld [vmem:[%s1 + $0x8] sm:$0xff]
    %90 = vset.pattern.permute.xlu0 0
    %91 = vperm.xlu0 %90, %v88
    %v92 = vpop.permute.xlu0 %91
    %93 = vset.pattern.permute.xlu0 0
    %94 = vperm.xlu0 %93, %v89
    %v95 = vpop.permute.xlu0 %94
    %vm96 = vcmp.eq.s32.totalorder %v87, %v92
    %vm97 = vcmp.eq.s32.totalorder %v87, %v95
    %v98 = vsel %vm96, 1, 0
    %v99 = vsel %vm97, 1, 0
    %v100 = vcvt.s32.f32 %v98
    %v101 = vcvt.s32.f32 %v99
    %v102 = vpack.c.bf16 %v101, %v100
    %v103 = vld [vmem:[#allocation2] sm:$0xf]
    %v104 = vld [vmem:[#allocation2 + $0x4] sm:$0xf]
    %v105 = vld [vmem:[#allocation2 + $0x8] sm:$0xf]
    %v106 = vld [vmem:[#allocation2 + $0xc] sm:$0xf]
    %v107 = vld [vmem:[#allocation5] sm:$0xf]
    %v108 = vld [vmem:[#allocation5 + $0x4] sm:$0xf]
    %v109 = vld [vmem:[#allocation5 + $0x8] sm:$0xf]
    %v110 = vld [vmem:[#allocation5 + $0xc] sm:$0xf]
    %v111 = vld [vmem:[#allocation5 + $0x10] sm:$0xf]
    %v112 = vld [vmem:[#allocation5 + $0x14] sm:$0xf]
    %v113 = vld [vmem:[#allocation5 + $0x18] sm:$0xf]
    %v114 = vld [vmem:[#allocation5 + $0x1c] sm:$0xf]
    %v115 = vld [vmem:[#allocation5 + $0x20] sm:$0xf]
    %v116 = vld [vmem:[#allocation5 + $0x24] sm:$0xf]
    %v117 = vld [vmem:[#allocation5 + $0x28] sm:$0xf]
    %v118 = vld [vmem:[#allocation5 + $0x2c] sm:$0xf]
    %v119 = vld [vmem:[#allocation5 + $0x30] sm:$0xf]
    %v120 = vld [vmem:[#allocation5 + $0x34] sm:$0xf]
    %v121 = vld [vmem:[#allocation5 + $0x38] sm:$0xf]
    %v122 = vld [vmem:[#allocation5 + $0x3c] sm:$0xf]
    %v139 = vunpack.c.l.b16 %v107
    %v140 = vunpack.c.l.b16 %v108
    %v141 = vunpack.c.l.b16 %v109
    %v142 = vunpack.c.l.b16 %v110
    %v143 = vunpack.c.l.b16 %v111
    %v144 = vunpack.c.l.b16 %v112
    %v145 = vunpack.c.l.b16 %v113
    %v146 = vunpack.c.l.b16 %v114
    %v147 = vunpack.c.l.b16 %v115
    %v148 = vunpack.c.l.b16 %v116
    %v149 = vunpack.c.l.b16 %v117
    %v150 = vunpack.c.l.b16 %v118
    %v151 = vunpack.c.l.b16 %v119
    %v152 = vunpack.c.l.b16 %v120
    %v153 = vunpack.c.l.b16 %v121
    %v154 = vunpack.c.l.b16 %v122
    %v155 = vpack.c.b16 %v140, %v139
    %v156 = vpack.c.b16 %v142, %v141
    %v157 = vpack.c.b16 %v144, %v143
    %v158 = vpack.c.b16 %v146, %v145
    %v159 = vpack.c.b16 %v148, %v147
    %v160 = vpack.c.b16 %v150, %v149
    %v161 = vpack.c.b16 %v152, %v151
    %v162 = vpack.c.b16 %v154, %v153
    %171 = vmatprep.subr.bf16.mxu0 0
    %172 = vmatpush1.bf16.msra.mxu0 %v155
    %173 = vmatprep.subr.bf16.mxu0 0
    %174 = vmatpush1.bf16.msra.mxu0 %v156
    %175 = vmatprep.subr.bf16.mxu0 0
    %176 = vmatpush1.bf16.msra.mxu0 %v157
    %177 = vmatprep.subr.bf16.mxu0 0
    %178 = vmatpush1.bf16.msra.mxu0 %v158
    %179 = vmatprep.subr.bf16.mxu0 0
    %180 = vmatpush1.bf16.msra.mxu0 %v159
    %181 = vmatprep.subr.bf16.mxu0 0
    %182 = vmatpush1.bf16.msra.mxu0 %v160
    %183 = vmatprep.subr.bf16.mxu0 0
    %184 = vmatpush1.bf16.msra.mxu0 %v161
    %185 = vmatprep.subr.bf16.mxu0 0
    %186 = vmatpush1.bf16.msra.mxu0 %v162
    %187 = vmatprep.subr.bf16.mxu0 0
    %188 = vmatpush1.bf16.msra.mxu0 0
    %189 = vmatprep.subr.bf16.mxu0 0
    %190 = vmatpush1.bf16.msra.mxu0 0
    %191 = vmatprep.subr.bf16.mxu0 0
    %192 = vmatpush1.bf16.msra.mxu0 0
    %193 = vmatprep.subr.bf16.mxu0 0
    %194 = vmatpush1.bf16.msra.mxu0 0
    %195 = vmatprep.subr.bf16.mxu0 0
    %196 = vmatpush1.bf16.msra.mxu0 0
    %197 = vmatprep.subr.bf16.mxu0 0
    %198 = vmatpush1.bf16.msra.mxu0 0
    %199 = vmatprep.subr.bf16.mxu0 0
    %200 = vmatpush1.bf16.msra.mxu0 0
    %201 = vmatprep.subr.bf16.mxu0 0
    %202 = vmatpush1.bf16.msra.mxu0 0
    %203 = vmatprep.mubr.bf16.mxu0 0
    %204 = vmatmul.mubr.bf16.gmra.mrb[0].mxu0 %v102
    %v205 = vpop.f32.mrb[0].mxu0
    %v206 = vadd.f32 0.0, %v205
    %v207 = vpop.f32.mrb[0].mxu0
    %v208 = vpop.f32.mrb[0].mxu0
    %v209 = vadd.f32 0.0, %v208
    %v210 = vpop.f32.mrb[0].mxu0
    %211 = vdwg.mxu0
    %v216 = vunpack.c.l.b16 %v103
    %v217 = vunpack.c.l.b16 %v104
    %v218 = vunpack.c.l.b16 %v105
    %v219 = vunpack.c.l.b16 %v106
    %v220 = vpack.c.b16 %v217, %v216
    %v221 = vpack.c.b16 %v219, %v218
    %vm224 = vcmask 261120
    %v226 = vsel %vm224, %v85, 0
    %228 = vmatprep.subr.bf16.mxu0 0
    %229 = vmatpush1.bf16.msra.mxu0 %v220
    %230 = vmatprep.subr.bf16.mxu0 0
    %231 = vmatpush1.bf16.msra.mxu0 %v221
    %232 = vmatprep.subr.bf16.mxu0 0
    %233 = vmatpush1.bf16.msra.mxu0 0
    %234 = vmatprep.subr.bf16.mxu0 0
    %235 = vmatpush1.bf16.msra.mxu0 0
    %236 = vmatprep.subr.bf16.mxu0 0
    %237 = vmatpush1.bf16.msra.mxu0 0
    %238 = vmatprep.subr.bf16.mxu0 0
    %239 = vmatpush1.bf16.msra.mxu0 0
    %240 = vmatprep.subr.bf16.mxu0 0
    %241 = vmatpush1.bf16.msra.mxu0 0
    %242 = vmatprep.subr.bf16.mxu0 0
    %243 = vmatpush1.bf16.msra.mxu0 0
    %244 = vmatprep.subr.bf16.mxu0 0
    %245 = vmatpush1.bf16.msra.mxu0 0
    %246 = vmatprep.subr.bf16.mxu0 0
    %247 = vmatpush1.bf16.msra.mxu0 0
    %248 = vmatprep.subr.bf16.mxu0 0
    %249 = vmatpush1.bf16.msra.mxu0 0
    %250 = vmatprep.subr.bf16.mxu0 0
    %251 = vmatpush1.bf16.msra.mxu0 0
    %252 = vmatprep.subr.bf16.mxu0 0
    %253 = vmatpush1.bf16.msra.mxu0 0
    %254 = vmatprep.subr.bf16.mxu0 0
    %255 = vmatpush1.bf16.msra.mxu0 0
    %256 = vmatprep.subr.bf16.mxu0 0
    %257 = vmatpush1.bf16.msra.mxu0 0
    %258 = vmatprep.subr.bf16.mxu0 0
    %259 = vmatpush1.bf16.msra.mxu0 0
    %260 = vmatprep.mubr.bf16.mxu0 0
    %261 = vmatmul.mubr.bf16.gmra.mrb[0].mxu0 %v226
    %v262 = vpop.f32.mrb[0].mxu0
    %v263 = vadd.f32 %v206, %v262
    %v264 = vpop.f32.mrb[0].mxu0
    %v265 = vpop.f32.mrb[0].mxu0
    %v266 = vadd.f32 %v209, %v265
    %v267 = vpop.f32.mrb[0].mxu0
    %268 = vdwg.mxu0
    %v269 = vld [vmem:[%s6] sm:$0x1]
    %v271 = vlaneseq
    %v272 = vshrl.u32 %v271, 7
    %v273 = vsub.s32 0, %v272
    %v274 = vrot.slane %v269, %v273
    %v276 = vadd.f32 %v263, %v274
    %v277 = vadd.f32 %v266, %v274
    %v278 = vmax.f32 %v276, 0.0
    %v279 = vmax.f32 %v277, 0.0
    %v280 = vpack.c.bf16 %v279, %v278
    %v281 = vld [vmem:[#allocation7] sm:$0xf]
    %v282 = vld [vmem:[#allocation7 + $0x4] sm:$0xf]
    %v283 = vld [vmem:[#allocation7 + $0x8] sm:$0xf]
    %v284 = vld [vmem:[#allocation7 + $0xc] sm:$0xf]
    %v285 = vld [vmem:[#allocation7 + $0x10] sm:$0xf]
    %v286 = vld [vmem:[#allocation7 + $0x14] sm:$0xf]
    %v287 = vld [vmem:[#allocation7 + $0x18] sm:$0xf]
    %v288 = vld [vmem:[#allocation7 + $0x1c] sm:$0xf]
    %v289 = vld [vmem:[#allocation7 + $0x20] sm:$0xf]
    %v290 = vld [vmem:[#allocation7 + $0x24] sm:$0xf]
    %v291 = vld [vmem:[#allocation7 + $0x28] sm:$0xf]
    %v292 = vld [vmem:[#allocation7 + $0x2c] sm:$0xf]
    %v293 = vld [vmem:[#allocation7 + $0x30] sm:$0xf]
    %v294 = vld [vmem:[#allocation7 + $0x34] sm:$0xf]
    %v295 = vld [vmem:[#allocation7 + $0x38] sm:$0xf]
    %v296 = vld [vmem:[#allocation7 + $0x3c] sm:$0xf]
    %v297 = vld [vmem:[%s6 + $0x1] sm:$0x1]
    %v299 = vlaneseq
    %v300 = vshrl.u32 %v299, 7
    %v301 = vsub.s32 0, %v300
    %v302 = vrot.slane %v297, %v301
    %v320 = vunpack.c.l.b16 %v281
    %v321 = vunpack.c.l.b16 %v282
    %v322 = vunpack.c.l.b16 %v283
    %v323 = vunpack.c.l.b16 %v284
    %v324 = vunpack.c.l.b16 %v285
    %v325 = vunpack.c.l.b16 %v286
    %v326 = vunpack.c.l.b16 %v287
    %v327 = vunpack.c.l.b16 %v288
    %v328 = vunpack.c.l.b16 %v289
    %v329 = vunpack.c.l.b16 %v290
    %v330 = vunpack.c.l.b16 %v291
    %v331 = vunpack.c.l.b16 %v292
    %v332 = vunpack.c.l.b16 %v293
    %v333 = vunpack.c.l.b16 %v294
    %v334 = vunpack.c.l.b16 %v295
    %v335 = vunpack.c.l.b16 %v296
    %v336 = vpack.c.b16 %v321, %v320
    %v337 = vpack.c.b16 %v323, %v322
    %v338 = vpack.c.b16 %v325, %v324
    %v339 = vpack.c.b16 %v327, %v326
    %v340 = vpack.c.b16 %v329, %v328
    %v341 = vpack.c.b16 %v331, %v330
    %v342 = vpack.c.b16 %v333, %v332
    %v343 = vpack.c.b16 %v335, %v334
    %352 = vmatprep.subr.bf16.mxu0 0
    %353 = vmatpush1.bf16.msra.mxu0 %v336
    %354 = vmatprep.subr.bf16.mxu0 0
    %355 = vmatpush1.bf16.msra.mxu0 %v337
    %356 = vmatprep.subr.bf16.mxu0 0
    %357 = vmatpush1.bf16.msra.mxu0 %v338
    %358 = vmatprep.subr.bf16.mxu0 0
    %359 = vmatpush1.bf16.msra.mxu0 %v339
    %360 = vmatprep.subr.bf16.mxu0 0
    %361 = vmatpush1.bf16.msra.mxu0 %v340
    %362 = vmatprep.subr.bf16.mxu0 0
    %363 = vmatpush1.bf16.msra.mxu0 %v341
    %364 = vmatprep.subr.bf16.mxu0 0
    %365 = vmatpush1.bf16.msra.mxu0 %v342
    %366 = vmatprep.subr.bf16.mxu0 0
    %367 = vmatpush1.bf16.msra.mxu0 %v343
    %368 = vmatprep.subr.bf16.mxu0 0
    %369 = vmatpush1.bf16.msra.mxu0 0
    %370 = vmatprep.subr.bf16.mxu0 0
    %371 = vmatpush1.bf16.msra.mxu0 0
    %372 = vmatprep.subr.bf16.mxu0 0
    %373 = vmatpush1.bf16.msra.mxu0 0
    %374 = vmatprep.subr.bf16.mxu0 0
    %375 = vmatpush1.bf16.msra.mxu0 0
    %376 = vmatprep.subr.bf16.mxu0 0
    %377 = vmatpush1.bf16.msra.mxu0 0
    %378 = vmatprep.subr.bf16.mxu0 0
    %379 = vmatpush1.bf16.msra.mxu0 0
    %380 = vmatprep.subr.bf16.mxu0 0
    %381 = vmatpush1.bf16.msra.mxu0 0
    %382 = vmatprep.subr.bf16.mxu0 0
    %383 = vmatpush1.bf16.msra.mxu0 0
    %384 = vmatprep.mubr.bf16.mxu0 0
    %385 = vmatmul.mubr.bf16.gmra.mrb[0].mxu0 %v280
    %v386 = vpop.f32.mrb[0].mxu0
    %v387 = vadd.f32 %v302, %v386
    %v388 = vpop.f32.mrb[0].mxu0
    %v389 = vpop.f32.mrb[0].mxu0
    %v390 = vadd.f32 %v302, %v389
    %v391 = vpop.f32.mrb[0].mxu0
    %392 = vdwg.mxu0
    %v393 = vmax.f32 %v387, 0.0
    %v394 = vmax.f32 %v390, 0.0
    %v395 = vpack.c.bf16 %v394, %v393
    %v396 = vld [vmem:[#allocation8] sm:$0xf]
    %v397 = vld [vmem:[#allocation8 + $0x4] sm:$0xf]
    %v398 = vld [vmem:[#allocation8 + $0x8] sm:$0xf]
    %v399 = vld [vmem:[#allocation8 + $0xc] sm:$0xf]
    %v400 = vld [vmem:[#allocation8 + $0x10] sm:$0xf]
    %v401 = vld [vmem:[#allocation8 + $0x14] sm:$0xf]
    %v402 = vld [vmem:[#allocation8 + $0x18] sm:$0xf]
    %v403 = vld [vmem:[#allocation8 + $0x1c] sm:$0xf]
    %v404 = vld [vmem:[#allocation8 + $0x20] sm:$0xf]
    %v405 = vld [vmem:[#allocation8 + $0x24] sm:$0xf]
    %v406 = vld [vmem:[#allocation8 + $0x28] sm:$0xf]
    %v407 = vld [vmem:[#allocation8 + $0x2c] sm:$0xf]
    %v408 = vld [vmem:[#allocation8 + $0x30] sm:$0xf]
    %v409 = vld [vmem:[#allocation8 + $0x34] sm:$0xf]
    %v410 = vld [vmem:[#allocation8 + $0x38] sm:$0xf]
    %v411 = vld [vmem:[#allocation8 + $0x3c] sm:$0xf]
    %v412 = vld [vmem:[%s6 + $0x2] sm:$0x1]
    %v414 = vlaneseq
    %v415 = vshrl.u32 %v414, 7
    %v416 = vsub.s32 0, %v415
    %v417 = vrot.slane %v412, %v416
    %v435 = vunpack.c.l.b16 %v396
    %v436 = vunpack.c.l.b16 %v397
    %v437 = vunpack.c.l.b16 %v398
    %v438 = vunpack.c.l.b16 %v399
    %v439 = vunpack.c.l.b16 %v400
    %v440 = vunpack.c.l.b16 %v401
    %v441 = vunpack.c.l.b16 %v402
    %v442 = vunpack.c.l.b16 %v403
    %v443 = vunpack.c.l.b16 %v404
    %v444 = vunpack.c.l.b16 %v405
    %v445 = vunpack.c.l.b16 %v406
    %v446 = vunpack.c.l.b16 %v407
    %v447 = vunpack.c.l.b16 %v408
    %v448 = vunpack.c.l.b16 %v409
    %v449 = vunpack.c.l.b16 %v410
    %v450 = vunpack.c.l.b16 %v411
    %v451 = vpack.c.b16 %v436, %v435
    %v452 = vpack.c.b16 %v438, %v437
    %v453 = vpack.c.b16 %v440, %v439
    %v454 = vpack.c.b16 %v442, %v441
    %v455 = vpack.c.b16 %v444, %v443
    %v456 = vpack.c.b16 %v446, %v445
    %v457 = vpack.c.b16 %v448, %v447
    %v458 = vpack.c.b16 %v450, %v449
    %467 = vmatprep.subr.bf16.mxu0 0
    %468 = vmatpush1.bf16.msra.mxu0 %v451
    %469 = vmatprep.subr.bf16.mxu0 0
    %470 = vmatpush1.bf16.msra.mxu0 %v452
    %471 = vmatprep.subr.bf16.mxu0 0
    %472 = vmatpush1.bf16.msra.mxu0 %v453
    %473 = vmatprep.subr.bf16.mxu0 0
    %474 = vmatpush1.bf16.msra.mxu0 %v454
    %475 = vmatprep.subr.bf16.mxu0 0
    %476 = vmatpush1.bf16.msra.mxu0 %v455
    %477 = vmatprep.subr.bf16.mxu0 0
    %478 = vmatpush1.bf16.msra.mxu0 %v456
    %479 = vmatprep.subr.bf16.mxu0 0
    %480 = vmatpush1.bf16.msra.mxu0 %v457
    %481 = vmatprep.subr.bf16.mxu0 0
    %482 = vmatpush1.bf16.msra.mxu0 %v458
    %483 = vmatprep.subr.bf16.mxu0 0
    %484 = vmatpush1.bf16.msra.mxu0 0
    %485 = vmatprep.subr.bf16.mxu0 0
    %486 = vmatpush1.bf16.msra.mxu0 0
    %487 = vmatprep.subr.bf16.mxu0 0
    %488 = vmatpush1.bf16.msra.mxu0 0
    %489 = vmatprep.subr.bf16.mxu0 0
    %490 = vmatpush1.bf16.msra.mxu0 0
    %491 = vmatprep.subr.bf16.mxu0 0
    %492 = vmatpush1.bf16.msra.mxu0 0
    %493 = vmatprep.subr.bf16.mxu0 0
    %494 = vmatpush1.bf16.msra.mxu0 0
    %495 = vmatprep.subr.bf16.mxu0 0
    %496 = vmatpush1.bf16.msra.mxu0 0
    %497 = vmatprep.subr.bf16.mxu0 0
    %498 = vmatpush1.bf16.msra.mxu0 0
    %499 = vmatprep.mubr.bf16.mxu0 0
    %500 = vmatmul.mubr.bf16.gmra.mrb[0].mxu0 %v395
    %v501 = vpop.f32.mrb[0].mxu0
    %v502 = vadd.f32 %v417, %v501
    %v503 = vpop.f32.mrb[0].mxu0
    %v504 = vpop.f32.mrb[0].mxu0
    %v505 = vadd.f32 %v417, %v504
    %v506 = vpop.f32.mrb[0].mxu0
    %507 = vdwg.mxu0
    %v508 = vpack.c.bf16 %v505, %v502
    %v510 = vunpack.c.l.b16 %v508
    %v511 = vunpack.c.h.b16 %v508
    %v512 = vpack.c.b16 %v510, %v510
    %v513 = vpack.c.b16 %v511, %v511
    %516 = vst [vmem:[#allocation10] sm:$0xf] %v512
    %517 = vst [vmem:[#allocation10 + $0x4] sm:$0xf] %v513
    // Predicated region
    $region46: #{tpu_custom_call.1} parent=1 // pred_check
      _
    $region47: #{tpu_custom_call.1} parent=1 // pred_check_branch
      %519 = sbr.rel (0) target = $region49
    $region48: #{tpu_custom_call.1} parent=1 // pred_region
      %s521 = ssub.s32 128, 128
      %522 = vsyncadd [#allocation4], %s521
      %s523 = sshll.u32 [#allocation10], 4
      %s524 = int_to_ptr.vmem [resolvable:$true] %s523
      %529 = dma.vmem_to_hbm [thread:$0]  %s524, 128, %s7, [#allocation4], 64, 64, 4
    $region49: #{tpu_custom_call.1} parent=1 // pred_fallthru
      _
    // Predicated region
    $region50: #{tpu_custom_call.1} parent=1 // pred_check
      _
    $region51: #{tpu_custom_call.1} parent=1 // pred_check_branch
      %531 = sbr.rel (0) target = $region53
    $region52: #{tpu_custom_call.1} parent=1 // pred_region
      %532 = dma.done [#allocation4], 128
    $region53: #{tpu_custom_call.1} parent=1 // pred_fallthru
      _
    %533 = vsyncpa [#allocation3], 1
    %534 = vsyncpa [#allocation6], 1
    %535 = vsyncpa [#allocation9], 1
    %536 = vsyncpa [#allocation4], 1

</llo_original>
